<compile_context>
chip_gen: v6e
topology: v6e:2x2x1
jax: 0.10.0
libtpu: 0.0.40
codegen_flags: <defaults>
</compile_context>

<pallas_src>
import functools
import itertools

import jax
import jax.numpy as jnp
import numpy as np
from jax.experimental import pallas as pl
from jax.experimental.pallas import tpu as pltpu


def _round_up(x, m):
    return ((x + m - 1) // m) * m


def _antecedent_kernel(x_ref, out_ref, *, mf_counts, m_stride, r_valid):
    """out[b, r] = prod_v x[b, v, idx_v(r)] with itertools.product ordering.

    x_ref:   (TB, V*M) membership values, column v*M + m  <->  x[b, v, m]
    out_ref: (TB, R_pad) rule firing strengths (lanes >= r_valid zero-filled)
    """
    tb, r_pad = out_ref.shape
    V = len(mf_counts)

    def col(v, k):  # (tb, 1) membership column for variable v, MF k
        j = v * m_stride + k
        return x_ref[:, j:j + 1]

    # Initialize with the fastest-varying variable (V-1).
    c = mf_counts[V - 1]
    base = (V - 1) * m_stride
    out_ref[:, :c] = x_ref[:, base:base + c]

    # Expand with the remaining variables, slowest (v=0) last:
    #   out[:, k*c + j] = x[:, v, k] * suffix[:, j]
    for v in range(V - 2, -1, -1):
        n_v = mf_counts[v]
        src = out_ref[:, :c]                       # load current suffix product
        for k in range(n_v - 1, -1, -1):           # k=0 overwrites src region last
            out_ref[:, k * c:(k + 1) * c] = src * col(v, k)
        c = c * n_v

    # Zero the padded rule lanes so the store stays a full, clean tile.
    if r_pad > r_valid:
        out_ref[:, r_valid:] = jnp.zeros((tb, r_pad - r_valid), out_ref.dtype)


def antecedent_layer(x, mf_counts=None, *, batch_tile=128):
    """rules[b, r] = prod_v x[b, v, mf_indices[r, v]] (itertools.product ordering)."""
    x = jnp.asarray(x, jnp.float32)
    B, V, M = x.shape
    if mf_counts is None:
        mf_counts = [M] * V
    mf_counts = [int(m) for m in mf_counts]
    assert len(mf_counts) == V and min(mf_counts) >= 1 and max(mf_counts) <= M
    R = int(np.prod(mf_counts))
    R_pad = _round_up(R, 128)

    # Batch tiling: multiple of 8 (f32 sublane).  Shrink for huge rule counts
    # (keep the out tile ~<=1 MiB) and to give >=2 grid blocks for v7x megacore.
    TB = min(batch_tile, _round_up(B, 8))
    while TB > 8 and TB * R_pad * 4 > (1 << 20):
        TB //= 2
    if (_round_up(B, TB) // TB == 1 and TB >= 16
            and _round_up(B, TB // 2) // (TB // 2) >= 2):
        TB //= 2
    B_pad = _round_up(B, TB)

    # Lane-dense (B, V*M) view of the memberships; zero-pad the batch.
    x2 = x.reshape(B, V * M)
    if B_pad != B:
        x2 = jnp.pad(x2, ((0, B_pad - B), (0, 0)))

    grid = (B_pad // TB,)
    out = pl.pallas_call(
        functools.partial(
            _antecedent_kernel,
            mf_counts=tuple(mf_counts), m_stride=M, r_valid=R),
        out_shape=jax.ShapeDtypeStruct((B_pad, R_pad), jnp.float32),
        grid=grid,
        in_specs=[pl.BlockSpec((TB, V * M), lambda i: (i, 0))],
        out_specs=pl.BlockSpec((TB, R_pad), lambda i: (i, 0)),
        compiler_params=pltpu.CompilerParams(
            dimension_semantics=("parallel",)),
    )(x2)
    return out[:B, :R]


if __name__ == "__main__":
    key = jax.random.PRNGKey(0)
    batch, n_vars, n_mfs = 6, 4, 3            # -> n_rules = 3**4 = 81
    x = jax.random.uniform(key, (batch, n_vars, n_mfs), dtype=jnp.float32)

    rules = antecedent_layer(x)
    rules = jax.block_until_ready(rules)

    # Pure-JAX reference with semantics identical to the PyTorch module.
    mf_idx = np.array(
        list(itertools.product(*[range(n_mfs) for _ in range(n_vars)])),
        dtype=np.int32)                                          # (n_rules, n_vars)
    ants = x[:, np.arange(n_vars)[None, :], mf_idx]              # (batch, n_rules, n_vars)
    ref = jnp.prod(ants, axis=-1)                                # (batch, n_rules)

    np.testing.assert_allclose(np.asarray(rules), np.asarray(ref),
                               rtol=1e-6, atol=1e-6)
    print("KERNEL_OK")
</pallas_src>

<mosaic_0001>
module attributes {stable_mosaic.version = 11 : i64} {
  func.func @_antecedent_kernel(%arg0: i32, %arg1: memref<8x12xf32, #tpu.memory_space<vmem>>, %arg2: memref<8x128xf32, #tpu.memory_space<vmem>>) attributes {dimension_semantics = [#tpu.dimension_semantics<parallel>], iteration_bounds = array<i64: 1>, scalar_prefetch = 0 : i64, scratch_operands = 0 : i64, tpu.core_type = #tpu.core_type<tc>, window_params = [{transform_indices = @transform_0, window_bounds = array<i64: 8, 12>}, {transform_indices = @transform_1, window_bounds = array<i64: 8, 128>}]} {
    %c0 = arith.constant 0 : index
    %c9 = arith.constant 9 : index
    %0 = vector.load %arg1[%c0, %c9] : memref<8x12xf32, #tpu.memory_space<vmem>>, vector<8x3xf32>
    %c0_0 = arith.constant 0 : index
    %c0_1 = arith.constant 0 : index
    %1 = vector.load %arg2[%c0_0, %c0_1] : memref<8x128xf32, #tpu.memory_space<vmem>>, vector<8x3xf32>
    tpu.vector_store %arg2[%c0_0, %c0_1], %0 {strides = array<i32>} : memref<8x128xf32, #tpu.memory_space<vmem>>, vector<8x3xf32>,
    %c0_2 = arith.constant 0 : index
    %c0_3 = arith.constant 0 : index
    %2 = vector.load %arg2[%c0_2, %c0_3] : memref<8x128xf32, #tpu.memory_space<vmem>>, vector<8x3xf32>
    %c0_4 = arith.constant 0 : index
    %c8 = arith.constant 8 : index
    %3 = vector.load %arg1[%c0_4, %c8] : memref<8x12xf32, #tpu.memory_space<vmem>>, vector<8x1xf32>
    %4 = vector.broadcast %3 : vector<8x1xf32> to vector<8x3xf32>
    %5 = arith.mulf %2, %4 : vector<8x3xf32>
    %c0_5 = arith.constant 0 : index
    %c6 = arith.constant 6 : index
    %6 = vector.load %arg2[%c0_5, %c6] : memref<8x128xf32, #tpu.memory_space<vmem>>, vector<8x3xf32>
    tpu.vector_store %arg2[%c0_5, %c6], %5 {strides = array<i32>} : memref<8x128xf32, #tpu.memory_space<vmem>>, vector<8x3xf32>,
    %c0_6 = arith.constant 0 : index
    %c7 = arith.constant 7 : index
    %7 = vector.load %arg1[%c0_6, %c7] : memref<8x12xf32, #tpu.memory_space<vmem>>, vector<8x1xf32>
    %8 = vector.broadcast %7 : vector<8x1xf32> to vector<8x3xf32>
    %9 = arith.mulf %2, %8 : vector<8x3xf32>
    %c0_7 = arith.constant 0 : index
    %c3 = arith.constant 3 : index
    %10 = vector.load %arg2[%c0_7, %c3] : memref<8x128xf32, #tpu.memory_space<vmem>>, vector<8x3xf32>
    tpu.vector_store %arg2[%c0_7, %c3], %9 {strides = array<i32>} : memref<8x128xf32, #tpu.memory_space<vmem>>, vector<8x3xf32>,
    %c0_8 = arith.constant 0 : index
    %c6_9 = arith.constant 6 : index
    %11 = vector.load %arg1[%c0_8, %c6_9] : memref<8x12xf32, #tpu.memory_space<vmem>>, vector<8x1xf32>
    %12 = vector.broadcast %11 : vector<8x1xf32> to vector<8x3xf32>
    %13 = arith.mulf %2, %12 : vector<8x3xf32>
    %c0_10 = arith.constant 0 : index
    %c0_11 = arith.constant 0 : index
    %14 = vector.load %arg2[%c0_10, %c0_11] : memref<8x128xf32, #tpu.memory_space<vmem>>, vector<8x3xf32>
    tpu.vector_store %arg2[%c0_10, %c0_11], %13 {strides = array<i32>} : memref<8x128xf32, #tpu.memory_space<vmem>>, vector<8x3xf32>,
    %c0_12 = arith.constant 0 : index
    %c0_13 = arith.constant 0 : index
    %15 = vector.load %arg2[%c0_12, %c0_13] : memref<8x128xf32, #tpu.memory_space<vmem>>, vector<8x9xf32>
    %c0_14 = arith.constant 0 : index
    %c5 = arith.constant 5 : index
    %16 = vector.load %arg1[%c0_14, %c5] : memref<8x12xf32, #tpu.memory_space<vmem>>, vector<8x1xf32>
    %17 = vector.broadcast %16 : vector<8x1xf32> to vector<8x9xf32>
    %18 = arith.mulf %15, %17 : vector<8x9xf32>
    %c0_15 = arith.constant 0 : index
    %c18 = arith.constant 18 : index
    %19 = vector.load %arg2[%c0_15, %c18] : memref<8x128xf32, #tpu.memory_space<vmem>>, vector<8x9xf32>
    tpu.vector_store %arg2[%c0_15, %c18], %18 {strides = array<i32>} : memref<8x128xf32, #tpu.memory_space<vmem>>, vector<8x9xf32>,
    %c0_16 = arith.constant 0 : index
    %c4 = arith.constant 4 : index
    %20 = vector.load %arg1[%c0_16, %c4] : memref<8x12xf32, #tpu.memory_space<vmem>>, vector<8x1xf32>
    %21 = vector.broadcast %20 : vector<8x1xf32> to vector<8x9xf32>
    %22 = arith.mulf %15, %21 : vector<8x9xf32>
    %c0_17 = arith.constant 0 : index
    %c9_18 = arith.constant 9 : index
    %23 = vector.load %arg2[%c0_17, %c9_18] : memref<8x128xf32, #tpu.memory_space<vmem>>, vector<8x9xf32>
    tpu.vector_store %arg2[%c0_17, %c9_18], %22 {strides = array<i32>} : memref<8x128xf32, #tpu.memory_space<vmem>>, vector<8x9xf32>,
    %c0_19 = arith.constant 0 : index
    %c3_20 = arith.constant 3 : index
    %24 = vector.load %arg1[%c0_19, %c3_20] : memref<8x12xf32, #tpu.memory_space<vmem>>, vector<8x1xf32>
    %25 = vector.broadcast %24 : vector<8x1xf32> to vector<8x9xf32>
    %26 = arith.mulf %15, %25 : vector<8x9xf32>
    %c0_21 = arith.constant 0 : index
    %c0_22 = arith.constant 0 : index
    %27 = vector.load %arg2[%c0_21, %c0_22] : memref<8x128xf32, #tpu.memory_space<vmem>>, vector<8x9xf32>
    tpu.vector_store %arg2[%c0_21, %c0_22], %26 {strides = array<i32>} : memref<8x128xf32, #tpu.memory_space<vmem>>, vector<8x9xf32>,
    %c0_23 = arith.constant 0 : index
    %c0_24 = arith.constant 0 : index
    %28 = vector.load %arg2[%c0_23, %c0_24] : memref<8x128xf32, #tpu.memory_space<vmem>>, vector<8x27xf32>
    %c0_25 = arith.constant 0 : index
    %c2 = arith.constant 2 : index
    %29 = vector.load %arg1[%c0_25, %c2] : memref<8x12xf32, #tpu.memory_space<vmem>>, vector<8x1xf32>
    %30 = vector.broadcast %29 : vector<8x1xf32> to vector<8x27xf32>
    %31 = arith.mulf %28, %30 : vector<8x27xf32>
    %c0_26 = arith.constant 0 : index
    %c54 = arith.constant 54 : index
    %32 = vector.load %arg2[%c0_26, %c54] : memref<8x128xf32, #tpu.memory_space<vmem>>, vector<8x27xf32>
    tpu.vector_store %arg2[%c0_26, %c54], %31 {strides = array<i32>} : memref<8x128xf32, #tpu.memory_space<vmem>>, vector<8x27xf32>,
    %c0_27 = arith.constant 0 : index
    %c1 = arith.constant 1 : index
    %33 = vector.load %arg1[%c0_27, %c1] : memref<8x12xf32, #tpu.memory_space<vmem>>, vector<8x1xf32>
    %34 = vector.broadcast %33 : vector<8x1xf32> to vector<8x27xf32>
    %35 = arith.mulf %28, %34 : vector<8x27xf32>
    %c0_28 = arith.constant 0 : index
    %c27 = arith.constant 27 : index
    %36 = vector.load %arg2[%c0_28, %c27] : memref<8x128xf32, #tpu.memory_space<vmem>>, vector<8x27xf32>
    tpu.vector_store %arg2[%c0_28, %c27], %35 {strides = array<i32>} : memref<8x128xf32, #tpu.memory_space<vmem>>, vector<8x27xf32>,
    %c0_29 = arith.constant 0 : index
    %c0_30 = arith.constant 0 : index
    %37 = vector.load %arg1[%c0_29, %c0_30] : memref<8x12xf32, #tpu.memory_space<vmem>>, vector<8x1xf32>
    %38 = vector.broadcast %37 : vector<8x1xf32> to vector<8x27xf32>
    %39 = arith.mulf %28, %38 : vector<8x27xf32>
    %c0_31 = arith.constant 0 : index
    %c0_32 = arith.constant 0 : index
    %40 = vector.load %arg2[%c0_31, %c0_32] : memref<8x128xf32, #tpu.memory_space<vmem>>, vector<8x27xf32>
    tpu.vector_store %arg2[%c0_31, %c0_32], %39 {strides = array<i32>} : memref<8x128xf32, #tpu.memory_space<vmem>>, vector<8x27xf32>,
    %cst = arith.constant 0.000000e+00 : f32
    %41 = vector.broadcast %cst : f32 to vector<8x47xf32>
    %c0_33 = arith.constant 0 : index
    %c81 = arith.constant 81 : index
    %42 = vector.load %arg2[%c0_33, %c81] : memref<8x128xf32, #tpu.memory_space<vmem>>, vector<8x47xf32>
    tpu.vector_store %arg2[%c0_33, %c81], %41 {strides = array<i32>} : memref<8x128xf32, #tpu.memory_space<vmem>>, vector<8x47xf32>,
    return
  }
  func.func @transform_0(%arg0: i32) -> (i32, i32) {
    %c0_i32 = arith.constant 0 : i32
    %c0_i32_0 = arith.constant 0 : i32
    return %arg0, %c0_i32 : i32, i32
  }
  func.func @transform_1(%arg0: i32) -> (i32, i32) {
    %c0_i32 = arith.constant 0 : i32
    %c0_i32_0 = arith.constant 0 : i32
    return %arg0, %c0_i32 : i32, i32
  }
}

</mosaic_0001>

<llo_original>
// kernel: tpu_custom_call.1
$region0: #{tpu_custom_call.1}
  #allocation0 [shape = 'u32[]', space=smem, size = 0x4, offset = 0x4, fixed_abs, tag = 'smem constant byte address 0x4 - core index']
  #allocation1 [shape = 'u32[144,128]{1,0:T(1,128)}', space=vmem, size = 0x12000, scoped, tag = 'internal scratch']
  %s0 = inlined_call_operand.hbm [shape: f32[8,12], index: 0, kind: input, shape index: {}]
  %s1 = inlined_call_operand.hbm [shape: f32[8,128], index: 1, kind: output, shape index: {}]
  %s2 = sld [smem:[#allocation0]]
  $region18: #{tpu_custom_call.1} parent=0
    _
  %s4 = ssub.s32 1, %s2
  %s5 = scalar_select 0, %s4, %s2
  $region1: #{tpu_custom_call.1} parent=0
    #allocation2 [shape = 'u8[4096]{0}', space=vmem, size = 0x1000, scoped, tag = 'input window, operand 0, single buffered']
    #allocation3 [shape = 's32[1]{0}', space=sflag, size = 0x4, scoped, tag = 'scoped memory for tpu_custom_call.1']
    #allocation4 [shape = 's32[1]{0}', space=sflag, size = 0x4, scoped, tag = 'scoped memory for tpu_custom_call.1']
    #allocation5 [shape = 'u8[4096]{0}', space=vmem, size = 0x1000, scoped, tag = 'output window, operand 0, single buffered']
    %6 = vsyncpa [#allocation3], 0
    %7 = vsyncpa [#allocation4], 0
    // Predicated region
    $region2: #{tpu_custom_call.1} parent=1 // pred_check
      _
    $region3: #{tpu_custom_call.1} parent=1 // pred_check_branch
      %9 = sbr.rel (0) target = $region5
    $region4: #{tpu_custom_call.1} parent=1 // pred_region
      %s11 = ssub.s32 128, 128
      %12 = vsyncadd [#allocation3], %s11
      %s14 = sshll.u32 [#allocation2], 4
      %s15 = int_to_ptr.vmem [resolvable:$true] %s14
      %17 = dma.hbm_to_vmem [thread:$0]  %s0, 128, %s15, [#allocation3]
    $region5: #{tpu_custom_call.1} parent=1 // pred_fallthru
      _
    // Predicated region
    $region6: #{tpu_custom_call.1} parent=1 // pred_check
      _
    $region7: #{tpu_custom_call.1} parent=1 // pred_check_branch
      %19 = sbr.rel (0) target = $region9
    $region8: #{tpu_custom_call.1} parent=1 // pred_region
      %20 = dma.done [#allocation3], 128
    $region9: #{tpu_custom_call.1} parent=1 // pred_fallthru
      _
    %v21 = vld [vmem:[#allocation2] sm:$0xff]
    %23 = vrot.lane.b32.xlu0 %v21, 119
    %v24 = vpop.permute.xlu0 %23
    %vm26 = vcmask 23552
    %27 = vst.msk [vmem:[#allocation5] sm:$0xff] %vm26, %v24
    %v28 = vld [vmem:[#allocation5] sm:$0xff]
    %v29 = vld [vmem:[#allocation2] sm:$0xff]
    %31 = vset.pattern.permute.xlu0 8
    %32 = vperm.xlu0 %31, %v29
    %v33 = vpop.permute.xlu0 %32
    %v35 = vmul.f32 %v28, %v33
    %37 = vrot.lane.b32.xlu0 %v35, 6
    %v38 = vpop.permute.xlu0 %37
    %vm40 = vcmask 72752
    %41 = vst.msk [vmem:[#allocation5] sm:$0xff] %vm40, %v38
    %v42 = vld [vmem:[#allocation2] sm:$0xff]
    %44 = vset.pattern.permute.xlu0 7
    %45 = vperm.xlu0 %44, %v42
    %v46 = vpop.permute.xlu0 %45
    %v48 = vmul.f32 %v28, %v46
    %50 = vrot.lane.b32.xlu0 %v48, 3
    %v51 = vpop.permute.xlu0 %50
    %vm53 = vcmask 48152
    %54 = vst.msk [vmem:[#allocation5] sm:$0xff] %vm53, %v51
    %v55 = vld [vmem:[#allocation2] sm:$0xff]
    %57 = vset.pattern.permute.xlu0 6
    %58 = vperm.xlu0 %57, %v55
    %v59 = vpop.permute.xlu0 %58
    %v61 = vmul.f32 %v28, %v59
    %62 = vst.msk [vmem:[#allocation5] sm:$0xff] %vm26, %v61
    %v63 = vld [vmem:[#allocation5] sm:$0xff]
    %v64 = vld [vmem:[#allocation2] sm:$0xff]
    %66 = vset.pattern.permute.xlu0 5
    %67 = vperm.xlu0 %66, %v64
    %v68 = vpop.permute.xlu0 %67
    %v70 = vmul.f32 %v63, %v68
    %72 = vrot.lane.b32.xlu0 %v70, 18
    %v73 = vpop.permute.xlu0 %72
    %vm75 = vcmask 220304
    %76 = vst.msk [vmem:[#allocation5] sm:$0xff] %vm75, %v73
    %v77 = vld [vmem:[#allocation2] sm:$0xff]
    %79 = vset.pattern.permute.xlu0 4
    %80 = vperm.xlu0 %79, %v77
    %v81 = vpop.permute.xlu0 %80
    %v83 = vmul.f32 %v63, %v81
    %85 = vrot.lane.b32.xlu0 %v83, 9
    %v86 = vpop.permute.xlu0 %85
    %vm88 = vcmask 146504
    %89 = vst.msk [vmem:[#allocation5] sm:$0xff] %vm88, %v86
    %v90 = vld [vmem:[#allocation2] sm:$0xff]
    %92 = vset.pattern.permute.xlu0 3
    %93 = vperm.xlu0 %92, %v90
    %v94 = vpop.permute.xlu0 %93
    %v96 = vmul.f32 %v63, %v94
    %vm97 = vcmask 72704
    %98 = vst.msk [vmem:[#allocation5] sm:$0xff] %vm97, %v96
    %v99 = vld [vmem:[#allocation5] sm:$0xff]
    %v100 = vld [vmem:[#allocation2] sm:$0xff]
    %102 = vset.pattern.permute.xlu0 2
    %103 = vperm.xlu0 %102, %v100
    %v104 = vpop.permute.xlu0 %103
    %v106 = vmul.f32 %v99, %v104
    %108 = vrot.lane.b32.xlu0 %v106, 54
    %v109 = vpop.permute.xlu0 %108
    %vm111 = vcmask 662960
    %112 = vst.msk [vmem:[#allocation5] sm:$0xff] %vm111, %v109
    %v113 = vld [vmem:[#allocation2] sm:$0xff]
    %115 = vset.pattern.permute.xlu0 1
    %116 = vperm.xlu0 %115, %v113
    %v117 = vpop.permute.xlu0 %116
    %v119 = vmul.f32 %v99, %v117
    %121 = vrot.lane.b32.xlu0 %v119, 27
    %v122 = vpop.permute.xlu0 %121
    %vm124 = vcmask 441560
    %125 = vst.msk [vmem:[#allocation5] sm:$0xff] %vm124, %v122
    %v126 = vld [vmem:[#allocation2] sm:$0xff]
    %128 = vset.pattern.permute.xlu0 0
    %129 = vperm.xlu0 %128, %v126
    %v130 = vpop.permute.xlu0 %129
    %v132 = vmul.f32 %v99, %v130
    %vm133 = vcmask 220160
    %134 = vst.msk [vmem:[#allocation5] sm:$0xff] %vm133, %v132
    %vm135 = vcmask 1048200
    %136 = vst.msk [vmem:[#allocation5] sm:$0xff] %vm135, 0.0
    // Predicated region
    $region10: #{tpu_custom_call.1} parent=1 // pred_check
      _
    $region11: #{tpu_custom_call.1} parent=1 // pred_check_branch
      %138 = sbr.rel (0) target = $region13
    $region12: #{tpu_custom_call.1} parent=1 // pred_region
      %s140 = ssub.s32 128, 128
      %141 = vsyncadd [#allocation4], %s140
      %s143 = sshll.u32 [#allocation5], 4
      %s144 = int_to_ptr.vmem [resolvable:$true] %s143
      %146 = dma.vmem_to_hbm [thread:$0]  %s144, 128, %s1, [#allocation4]
    $region13: #{tpu_custom_call.1} parent=1 // pred_fallthru
      _
    // Predicated region
    $region14: #{tpu_custom_call.1} parent=1 // pred_check
      _
    $region15: #{tpu_custom_call.1} parent=1 // pred_check_branch
      %148 = sbr.rel (0) target = $region17
    $region16: #{tpu_custom_call.1} parent=1 // pred_region
      %149 = dma.done [#allocation4], 128
    $region17: #{tpu_custom_call.1} parent=1 // pred_fallthru
      _
    %150 = vsyncpa [#allocation3], 1
    %151 = vsyncpa [#allocation4], 1

</llo_original>
